<compile_context>
chip_gen: v7x
topology: tpu7x:2x2x1
jax: 0.10.0
libtpu: 0.0.40
codegen_flags: <defaults>
</compile_context>

<pallas_src>
import functools

import jax
import jax.numpy as jnp
from jax.experimental import pallas as pl
from jax.experimental.pallas import tpu as pltpu


def _upscale_kernel(x_ref, w_ref, b_ref, o_ref,
                    carry_ref, slab_ref, im2col_ref, *, L, K):
    # x_ref:      (1, C_in, TLx)       input length-tile (length on lanes)
    # w_ref:      (C_out, K*C_in)      fused & flipped taps: W[ci, co, K-1-k]
    # b_ref:      (C_out, 1)
    # o_ref:      (1, C_out, TLo)      output length-tile (length on lanes)
    # carry_ref:  (C_in, K-1)          last K-1 input cols of the previous tile
    # slab_ref:   (C_in, TLo + K - 1)  [halo | tile | (right zeros)]
    # im2col_ref: (K*C_in, TLo)        fused-contraction RHS
    C_in, TLx = x_ref.shape[1], x_ref.shape[2]
    TLo = o_ref.shape[2]
    lt = pl.program_id(1)

    # Left zero padding of the transposed conv: reset the halo at the start of
    # every sequence.
    @pl.when(lt == 0)
    def _():
        carry_ref[...] = jnp.zeros_like(carry_ref)

    # Load the tile; zero out columns past the true end of x.  This handles
    # both the ragged last x tile and the K-1 columns of right zero padding
    # (the x index_map clamps; the mask kills whatever was loaded there).
    col = jax.lax.broadcasted_iota(jnp.int32, (C_in, TLx), 1) + lt * TLx
    x_tile = jnp.where(col < L, x_ref[0].astype(jnp.float32), 0.0)

    # Assemble the locally padded slab: [halo | x_tile | (right zeros)].
    slab_ref[:, 0:K - 1] = carry_ref[...]
    slab_ref[:, K - 1:K - 1 + TLx] = x_tile
    if TLo > TLx:  # single-block path only: explicit right zero padding
        slab_ref[:, K - 1 + TLx:] = jnp.zeros((C_in, TLo - TLx), jnp.float32)

    # Halo for the next length tile of this sequence (read-before-write above).
    carry_ref[...] = x_tile[:, TLx - (K - 1):]

    # im2col: row block k holds the slab shifted by k, so a single matmul
    # performs all K taps (contraction depth K*C_in instead of C_in).
    for k in range(K):
        im2col_ref[k * C_in:(k + 1) * C_in, :] = slab_ref[:, k:k + TLo]

    # One MXU push: (C_out, K*C_in) @ (K*C_in, TLo), f32 accumulation, then a
    # single lane-dense store of the tile.
    y = jnp.dot(w_ref[...].astype(jnp.float32), im2col_ref[...],
                preferred_element_type=jnp.float32)
    o_ref[0] = (y + b_ref[...].astype(jnp.float32)).astype(o_ref.dtype)


def upscale_conv_transpose1d(x, weight, bias, *, length_tile=1024):
    """Matches nn.ConvTranspose1d(C_in, C_out, kernel_size=K), stride=1, pad=0.

    x:      (N, C_in, L)      (PyTorch NCL layout, kept as-is)
    weight: (C_in, C_out, K)
    bias:   (C_out,)
    returns (N, C_out, L + K - 1)
    """
    N, C_in, L = x.shape
    C_in_w, C_out, K = weight.shape
    assert C_in == C_in_w
    L_out = L + K - 1
    assert L >= K - 1, "sequence shorter than the kernel halo"

    # Fuse the K taps into one contraction (done once, tiny):
    #   Wmat[co, k*C_in + ci] = W[ci, co, K-1-k]
    w_mat = jnp.transpose(weight[:, :, ::-1], (1, 2, 0)).reshape(C_out, K * C_in)
    b_col = bias.reshape(C_out, 1)

    if L >= 128:
        # Lane-tiled path: tiles are multiples of 128 lanes, no larger than L.
        tl = max(128, (min(length_tile, L) // 128) * 128)
        tl_x, tl_o = tl, tl
        grid_t = pl.cdiv(L_out, tl)
        x_last_block = pl.cdiv(L, tl) - 1
    else:
        # Tiny-sequence path: one block covering the full length per batch elem.
        tl_x, tl_o = L, L_out
        grid_t = 1
        x_last_block = 0

    kernel = functools.partial(_upscale_kernel, L=L, K=K)

    return pl.pallas_call(
        kernel,
        out_shape=jax.ShapeDtypeStruct((N, C_out, L_out), x.dtype),
        grid_spec=pltpu.PrefetchScalarGridSpec(
            num_scalar_prefetch=0,
            grid=(N, grid_t),
            in_specs=[
                # x tile; clamp the block index so trailing (all-masked) output
                # tiles never DMA out of bounds.
                pl.BlockSpec((1, C_in, tl_x),
                             lambda n, lt: (n, 0, jnp.minimum(lt, x_last_block))),
                # fused weights / bias stay resident (constant index map).
                pl.BlockSpec((C_out, K * C_in), lambda n, lt: (0, 0)),
                pl.BlockSpec((C_out, 1), lambda n, lt: (0, 0)),
            ],
            out_specs=pl.BlockSpec((1, C_out, tl_o), lambda n, lt: (n, 0, lt)),
            scratch_shapes=[
                pltpu.VMEM((C_in, K - 1), jnp.float32),           # halo carry
                pltpu.VMEM((C_in, tl_o + K - 1), jnp.float32),    # padded slab
                pltpu.VMEM((K * C_in, tl_o), jnp.float32),        # im2col RHS
            ],
        ),
        compiler_params=pltpu.CompilerParams(
            # N is independent (megacore-shardable); the length axis carries
            # the K-1 halo in scratch, so it must stay sequential.
            dimension_semantics=("parallel", "arbitrary"),
        ),
    )(x, w_mat, b_col)


def _reference(x, weight, bias):
    # Pure-JAX reference of ConvTranspose1d (stride=1, padding=0).
    N, C_in, L = x.shape
    _, C_out, K = weight.shape
    L_out = L + K - 1
    y = jnp.zeros((N, C_out, L_out), jnp.float32)
    for k in range(K):
        y = y.at[:, :, k:k + L].add(jnp.einsum("ncl,co->nol", x, weight[:, :, k]))
    return (y + bias[None, :, None]).astype(x.dtype)


if __name__ == "__main__":
    key = jax.random.PRNGKey(0)
    k1, k2, k3, k4, k5, k6 = jax.random.split(key, 6)

    # --- shapes implied by UpScale: (N, C_in, L) with kernel_size=4 ----------
    N, C_in, C_out, L, K = 2, 4, 8, 16, 4
    x = jax.random.normal(k1, (N, C_in, L), dtype=jnp.float32)
    weight = 0.1 * jax.random.normal(k2, (C_in, C_out, K), dtype=jnp.float32)
    bias = 0.1 * jax.random.normal(k3, (C_out,), dtype=jnp.float32)

    out = upscale_conv_transpose1d(x, weight, bias)
    jax.block_until_ready(out)
    ref = _reference(x, weight, bias)
    assert out.shape == (N, C_out, L + K - 1)
    assert jnp.allclose(out, ref, atol=1e-4, rtol=1e-4)

    # --- exercise the lane-tiled path (L >= 128): halo carried across tiles,
    #     clamped trailing x tile and ragged output edge ----------------------
    N2, Ci2, Co2, L2 = 2, 8, 16, 384
    x2 = jax.random.normal(k4, (N2, Ci2, L2), dtype=jnp.float32)
    w2 = 0.1 * jax.random.normal(k5, (Ci2, Co2, K), dtype=jnp.float32)
    b2 = 0.1 * jax.random.normal(k6, (Co2,), dtype=jnp.float32)
    out2 = upscale_conv_transpose1d(x2, w2, b2, length_tile=128)
    jax.block_until_ready(out2)
    assert jnp.allclose(out2, _reference(x2, w2, b2), atol=1e-4, rtol=1e-4)

    print("KERNEL_OK")
</pallas_src>

<mosaic_0001>
module attributes {stable_mosaic.version = 11 : i64} {
  func.func @_upscale_kernel(%arg0: i32, %arg1: i32, %arg2: memref<1x4x16xf32, #tpu.memory_space<vmem>>, %arg3: memref<8x16xf32, #tpu.memory_space<vmem>>, %arg4: memref<8x1xf32, #tpu.memory_space<vmem>>, %arg5: memref<1x8x19xf32, #tpu.memory_space<vmem>>, %arg6: memref<4x3xf32, #tpu.memory_space<vmem>>, %arg7: memref<4x22xf32, #tpu.memory_space<vmem>>, %arg8: memref<16x19xf32, #tpu.memory_space<vmem>>) attributes {dimension_semantics = [#tpu.dimension_semantics<parallel>, #tpu.dimension_semantics<arbitrary>], iteration_bounds = array<i64: 2, 1>, scalar_prefetch = 0 : i64, scratch_operands = 3 : i64, tpu.core_type = #tpu.core_type<tc>, window_params = [{transform_indices = @transform_0, window_bounds = array<i64: 1, 4, 16>}, {pipeline_mode = #tpu.pipeline_mode<synchronous>, transform_indices = @transform_1, window_bounds = array<i64: 8, 16>}, {pipeline_mode = #tpu.pipeline_mode<synchronous>, transform_indices = @transform_2, window_bounds = array<i64: 8, 1>}, {transform_indices = @transform_3, window_bounds = array<i64: 1, 8, 19>}]} {
    %c0_i32 = arith.constant 0 : i32
    %0 = arith.cmpi eq, %arg1, %c0_i32 : i32
    %1 = arith.extui %0 : i1 to i32
    %c0_i32_0 = arith.constant 0 : i32
    %2 = arith.cmpi ne, %1, %c0_i32_0 : i32
    scf.if %2 {
      %cst_34 = arith.constant 0.000000e+00 : f32
      %37 = vector.broadcast %cst_34 : f32 to vector<4x3xf32>
      %c0_35 = arith.constant 0 : index
      %c0_36 = arith.constant 0 : index
      %38 = vector.load %arg6[%c0_35, %c0_36] : memref<4x3xf32, #tpu.memory_space<vmem>>, vector<4x3xf32>
      tpu.vector_store %arg6[%c0_35, %c0_36], %37 {strides = array<i32>} : memref<4x3xf32, #tpu.memory_space<vmem>>, vector<4x3xf32>,
    } else {
    }
    %3 = tpu.iota {dimensions = array<i32: 1>} : vector<4x16xi32>
    %c16_i32 = arith.constant 16 : i32
    %4 = arith.muli %arg1, %c16_i32 : i32
    %5 = vector.broadcast %4 : i32 to vector<4x16xi32>
    %6 = arith.addi %3, %5 : vector<4x16xi32>
    %c16_i32_1 = arith.constant 16 : i32
    %7 = vector.broadcast %c16_i32_1 : i32 to vector<4x16xi32>
    %8 = arith.cmpi slt, %6, %7 : vector<4x16xi32>
    %c0 = arith.constant 0 : index
    %c0_2 = arith.constant 0 : index
    %c0_3 = arith.constant 0 : index
    %9 = vector.load %arg2[%c0, %c0_2, %c0_3] : memref<1x4x16xf32, #tpu.memory_space<vmem>>, vector<1x4x16xf32>
    %10 = vector.shape_cast %9 : vector<1x4x16xf32> to vector<4x16xf32>
    %cst = arith.constant 0.000000e+00 : f32
    %11 = vector.broadcast %cst : f32 to vector<4x16xf32>
    %12 = arith.select %8, %10, %11 : vector<4x16xi1>, vector<4x16xf32>
    %c0_4 = arith.constant 0 : index
    %c0_5 = arith.constant 0 : index
    %13 = vector.load %arg6[%c0_4, %c0_5] : memref<4x3xf32, #tpu.memory_space<vmem>>, vector<4x3xf32>
    %c0_6 = arith.constant 0 : index
    %c0_7 = arith.constant 0 : index
    %14 = vector.load %arg7[%c0_6, %c0_7] : memref<4x22xf32, #tpu.memory_space<vmem>>, vector<4x3xf32>
    tpu.vector_store %arg7[%c0_6, %c0_7], %13 {strides = array<i32>} : memref<4x22xf32, #tpu.memory_space<vmem>>, vector<4x3xf32>,
    %c0_8 = arith.constant 0 : index
    %c3 = arith.constant 3 : index
    %15 = vector.load %arg7[%c0_8, %c3] : memref<4x22xf32, #tpu.memory_space<vmem>>, vector<4x16xf32>
    tpu.vector_store %arg7[%c0_8, %c3], %12 {strides = array<i32>} : memref<4x22xf32, #tpu.memory_space<vmem>>, vector<4x16xf32>,
    %cst_9 = arith.constant 0.000000e+00 : f32
    %16 = vector.broadcast %cst_9 : f32 to vector<4x3xf32>
    %c0_10 = arith.constant 0 : index
    %c19 = arith.constant 19 : index
    %17 = vector.load %arg7[%c0_10, %c19] : memref<4x22xf32, #tpu.memory_space<vmem>>, vector<4x3xf32>
    tpu.vector_store %arg7[%c0_10, %c19], %16 {strides = array<i32>} : memref<4x22xf32, #tpu.memory_space<vmem>>, vector<4x3xf32>,
    %18 = vector.extract_strided_slice %12 {offsets = [0, 13], sizes = [4, 3], strides = [1, 1]} : vector<4x16xf32> to vector<4x3xf32>
    %c0_11 = arith.constant 0 : index
    %c0_12 = arith.constant 0 : index
    %19 = vector.load %arg6[%c0_11, %c0_12] : memref<4x3xf32, #tpu.memory_space<vmem>>, vector<4x3xf32>
    tpu.vector_store %arg6[%c0_11, %c0_12], %18 {strides = array<i32>} : memref<4x3xf32, #tpu.memory_space<vmem>>, vector<4x3xf32>,
    %c0_13 = arith.constant 0 : index
    %c0_14 = arith.constant 0 : index
    %20 = vector.load %arg7[%c0_13, %c0_14] : memref<4x22xf32, #tpu.memory_space<vmem>>, vector<4x19xf32>
    %c0_15 = arith.constant 0 : index
    %c0_16 = arith.constant 0 : index
    %21 = vector.load %arg8[%c0_15, %c0_16] : memref<16x19xf32, #tpu.memory_space<vmem>>, vector<4x19xf32>
    tpu.vector_store %arg8[%c0_15, %c0_16], %20 {strides = array<i32>} : memref<16x19xf32, #tpu.memory_space<vmem>>, vector<4x19xf32>,
    %c0_17 = arith.constant 0 : index
    %c1 = arith.constant 1 : index
    %22 = vector.load %arg7[%c0_17, %c1] : memref<4x22xf32, #tpu.memory_space<vmem>>, vector<4x19xf32>
    %c4 = arith.constant 4 : index
    %c0_18 = arith.constant 0 : index
    %23 = vector.load %arg8[%c4, %c0_18] : memref<16x19xf32, #tpu.memory_space<vmem>>, vector<4x19xf32>
    tpu.vector_store %arg8[%c4, %c0_18], %22 {strides = array<i32>} : memref<16x19xf32, #tpu.memory_space<vmem>>, vector<4x19xf32>,
    %c0_19 = arith.constant 0 : index
    %c2 = arith.constant 2 : index
    %24 = vector.load %arg7[%c0_19, %c2] : memref<4x22xf32, #tpu.memory_space<vmem>>, vector<4x19xf32>
    %c8 = arith.constant 8 : index
    %c0_20 = arith.constant 0 : index
    %25 = vector.load %arg8[%c8, %c0_20] : memref<16x19xf32, #tpu.memory_space<vmem>>, vector<4x19xf32>
    tpu.vector_store %arg8[%c8, %c0_20], %24 {strides = array<i32>} : memref<16x19xf32, #tpu.memory_space<vmem>>, vector<4x19xf32>,
    %c0_21 = arith.constant 0 : index
    %c3_22 = arith.constant 3 : index
    %26 = vector.load %arg7[%c0_21, %c3_22] : memref<4x22xf32, #tpu.memory_space<vmem>>, vector<4x19xf32>
    %c12 = arith.constant 12 : index
    %c0_23 = arith.constant 0 : index
    %27 = vector.load %arg8[%c12, %c0_23] : memref<16x19xf32, #tpu.memory_space<vmem>>, vector<4x19xf32>
    tpu.vector_store %arg8[%c12, %c0_23], %26 {strides = array<i32>} : memref<16x19xf32, #tpu.memory_space<vmem>>, vector<4x19xf32>,
    %c0_24 = arith.constant 0 : index
    %c0_25 = arith.constant 0 : index
    %28 = vector.load %arg3[%c0_24, %c0_25] : memref<8x16xf32, #tpu.memory_space<vmem>>, vector<8x16xf32>
    %c0_26 = arith.constant 0 : index
    %c0_27 = arith.constant 0 : index
    %29 = vector.load %arg8[%c0_26, %c0_27] : memref<16x19xf32, #tpu.memory_space<vmem>>, vector<16x19xf32>
    %cst_28 = arith.constant dense<0.000000e+00> : vector<8x19xf32>
    %30 = tpu.matmul %28, %29, %cst_28 {dimension_numbers = #tpu.dot_dimension_numbers<[1], [0], [0], [1], [0, 0, 1, 1], [], []>} : vector<8x16xf32>, vector<16x19xf32>, vector<8x19xf32> -> vector<8x19xf32>
    %c0_29 = arith.constant 0 : index
    %c0_30 = arith.constant 0 : index
    %31 = vector.load %arg4[%c0_29, %c0_30] : memref<8x1xf32, #tpu.memory_space<vmem>>, vector<8x1xf32>
    %32 = vector.broadcast %31 : vector<8x1xf32> to vector<8x19xf32>
    %33 = arith.addf %30, %32 : vector<8x19xf32>
    %c0_31 = arith.constant 0 : index
    %c0_32 = arith.constant 0 : index
    %c0_33 = arith.constant 0 : index
    %34 = vector.load %arg5[%c0_31, %c0_32, %c0_33] : memref<1x8x19xf32, #tpu.memory_space<vmem>>, vector<1x8x19xf32>
    %35 = vector.shape_cast %34 : vector<1x8x19xf32> to vector<8x19xf32>
    %36 = vector.shape_cast %33 : vector<8x19xf32> to vector<1x8x19xf32>
    tpu.vector_store %arg5[%c0_31, %c0_32, %c0_33], %36 {strides = array<i32>} : memref<1x8x19xf32, #tpu.memory_space<vmem>>, vector<1x8x19xf32>,
    return
  }
  func.func @transform_0(%arg0: i32, %arg1: i32) -> (i32, i32, i32) {
    %c0_i32 = arith.constant 0 : i32
    %0 = arith.minsi %arg1, %c0_i32 : i32
    %c0_i32_0 = arith.constant 0 : i32
    %c0_i32_1 = arith.constant 0 : i32
    return %arg0, %c0_i32_0, %0 : i32, i32, i32
  }
  func.func @transform_1(%arg0: i32, %arg1: i32) -> (i32, i32) {
    %c0_i32 = arith.constant 0 : i32
    %c0_i32_0 = arith.constant 0 : i32
    %c0_i32_1 = arith.constant 0 : i32
    return %c0_i32, %c0_i32_0 : i32, i32
  }
  func.func @transform_2(%arg0: i32, %arg1: i32) -> (i32, i32) {
    %c0_i32 = arith.constant 0 : i32
    %c0_i32_0 = arith.constant 0 : i32
    %c0_i32_1 = arith.constant 0 : i32
    return %c0_i32, %c0_i32_0 : i32, i32
  }
  func.func @transform_3(%arg0: i32, %arg1: i32) -> (i32, i32, i32) {
    %c0_i32 = arith.constant 0 : i32
    %c0_i32_0 = arith.constant 0 : i32
    return %arg0, %c0_i32, %arg1 : i32, i32, i32
  }
}

</mosaic_0001>

<llo_original>
// kernel: tpu_custom_call.1
$region0: #{tpu_custom_call.1}
  #allocation0 [shape = 'u32[]', space=smem, size = 0x4, offset = 0x4, fixed_abs, tag = 'smem constant byte address 0x4 - core index']
  #allocation1 [shape = 'u32[144,128]{1,0:T(1,128)}', space=vmem, size = 0x12000, scoped, tag = 'internal scratch']
  #allocation2 [shape = 'f32[4,3]{1,0:T(4,128)}', space=vmem, size = 0x800, scoped, tag = 'scratch operand']
  #allocation3 [shape = 'f32[4,22]{1,0:T(4,128)}', space=vmem, size = 0x800, scoped, tag = 'scratch operand']
  #allocation4 [shape = 'f32[16,19]{1,0:T(8,128)}', space=vmem, size = 0x2000, scoped, tag = 'scratch operand']
  %s0 = inlined_call_operand.vmem [shape: f32[2,4,16], index: 0, kind: input, shape index: {}]
  %s1 = inlined_call_operand.hbm [shape: f32[8,16], index: 1, kind: input, shape index: {}]
  %s2 = inlined_call_operand.vmem [shape: f32[8,1], index: 2, kind: input, shape index: {}]
  %s3 = inlined_call_operand.hbm [shape: f32[2,8,19], index: 3, kind: output, shape index: {}]
  %s4 = sld [smem:[#allocation0]]
  $region53: #{tpu_custom_call.1} parent=0
    _
  %s6 = ssub.s32 1, %s4
  %s7 = scalar_select 0, %s6, %s4
  $region1: #{tpu_custom_call.1} parent=0
    #allocation5 [shape = 'u8[4096]{0}', space=vmem, size = 0x1000, scoped, tag = 'input window, operand 1, single buffered']
    #allocation6 [shape = 's32[2]{0}', space=sflag, size = 0x8, scoped, tag = 'scoped memory for tpu_custom_call.1']
    #allocation7 [shape = 's32[2]{0}', space=sflag, size = 0x8, scoped, tag = 'scoped memory for tpu_custom_call.1']
    #allocation8 [shape = 'u8[8192]{0}', space=vmem, size = 0x2000, scoped, tag = 'output window, operand 0']
    %8 = vsyncpa [#allocation6], 0
    %9 = vsyncpa [#allocation7], 0
    %s10 = scalar_lea.sflag [#allocation7], 1
    %11 = vsyncpa %s10, 0
    loop: start=0, step=1, limit=4
    $region2: #{tpu_custom_call.1} parent=1 // loop_pre_header
      _
    $region3: #{tpu_custom_call.1} parent=1 // loop_header
      %s13 = sphi 0, %s17
      %p14 = scmp.ge.s32.totalorder %s13, 4
      %s20 = sphi 0, %s32
      %s21 = sphi 0, %s28
      %s22 = sphi 0, %s20
      %s23 = sphi 0, %s21
      %s24 = sphi 0, %s22
      %s25 = sphi 0, %s23
      %s41 = sphi 0, %s43
      %s44 = sphi 0, %s41
      %s45 = sphi 0, %s44
      %s61 = sphi 0, %s45
      %s65 = sphi 0, %s65
      %s67 = sphi 0, %s65
      %s68 = sphi 0, %s67
      %s82 = sphi 0, %s68
      %s86 = sphi 0, %s86
      %s88 = sphi 0, %s86
      %s89 = sphi 0, %s88
      %s103 = sphi 0, %s89
      %s111 = sphi 0, %s113
      %s114 = sphi 0, %s111
      %s115 = sphi 0, %s114
      %s131 = sphi 0, %s115
    $region4: #{tpu_custom_call.1} parent=1 // loop_header_branch
      %16 = sbr.rel (%p14) target = $region8
    $region5: #{tpu_custom_call.1} parent=1 // loop_body
      %s18 = ssub.s32 %s13, 1
      %s19 = ssub.s32 %s13, 2
      %s26 = sadd.s32 1, %s21
      %p27 = scmp.ge.s32.totalorder %s26, 1
      %s28 = scalar_select %p27, 0, %s26
      %s29 = sadd.s32 1, %s20
      %s30 = scalar_select %p27, %s29, %s20
      %p31 = scmp.ge.s32.totalorder %s30, 2
      %s32 = scalar_select %p31, 0, %s30
      %p33 = scmp.lt.s32.totalorder %s21, 0
      %s34 = scalar_select %p33, %s21, 0
      %p35 = scmp.lt.s32.totalorder %s28, 0
      %s36 = scalar_select %p35, %s28, 0
      %s37 = ssub.s32 %s20, %s32
      %s38 = ssub.s32 %s34, %s36
      %s39 = sor.u32 %s37, %s38
      %p40 = scmp.eq.s32.totalorder %s39, 0
      %s42 = sadd.s32 %s41, 1
      %s43 = scalar_select %p40, %s41, %s42
      %p46 = pneg %p40
      %p47 = scmp.eq.s32.totalorder %s13, 1
      %p48 = por %p46, %p47
      %p49 = scmp.ne.s32.totalorder %s41, %s44
      %p50 = scmp.eq.s32.totalorder %s13, 0
      %p51 = por %p49, %p50
      %p52 = scmp.ne.s32.totalorder %s41, %s44
      %p53 = scmp.eq.s32.totalorder %s18, 1
      %p54 = por %p52, %p53
      %p55 = scmp.ne.s32.totalorder %s44, %s45
      %p56 = scmp.eq.s32.totalorder %s18, 0
      %p57 = por %p55, %p56
      %p58 = scmp.ne.s32.totalorder %s44, %s45
      %p59 = scmp.eq.s32.totalorder %s19, 1
      %p60 = por %p58, %p59
      %p62 = scmp.ne.s32.totalorder %s45, %s61
      %p63 = scmp.eq.s32.totalorder %s19, 0
      %p64 = por %p62, %p63
      %s66 = sadd.s32 %s65, 1
      %p69 = scmp.eq.s32.totalorder %s13, 1
      %p70 = scmp.ne.s32.totalorder %s65, %s67
      %p71 = scmp.eq.s32.totalorder %s13, 0
      %p72 = por %p70, %p71
      %p73 = scmp.ne.s32.totalorder %s65, %s67
      %p74 = scmp.eq.s32.totalorder %s18, 1
      %p75 = por %p73, %p74
      %p76 = scmp.ne.s32.totalorder %s67, %s68
      %p77 = scmp.eq.s32.totalorder %s18, 0
      %p78 = por %p76, %p77
      %p79 = scmp.ne.s32.totalorder %s67, %s68
      %p80 = scmp.eq.s32.totalorder %s19, 1
      %p81 = por %p79, %p80
      %p83 = scmp.ne.s32.totalorder %s68, %s82
      %p84 = scmp.eq.s32.totalorder %s19, 0
      %p85 = por %p83, %p84
      %s87 = sadd.s32 %s86, 1
      %p90 = scmp.eq.s32.totalorder %s13, 1
      %p91 = scmp.ne.s32.totalorder %s86, %s88
      %p92 = scmp.eq.s32.totalorder %s13, 0
      %p93 = por %p91, %p92
      %p94 = scmp.ne.s32.totalorder %s86, %s88
      %p95 = scmp.eq.s32.totalorder %s18, 1
      %p96 = por %p94, %p95
      %p97 = scmp.ne.s32.totalorder %s88, %s89
      %p98 = scmp.eq.s32.totalorder %s18, 0
      %p99 = por %p97, %p98
      %p100 = scmp.ne.s32.totalorder %s88, %s89
      %p101 = scmp.eq.s32.totalorder %s19, 1
      %p102 = por %p100, %p101
      %p104 = scmp.ne.s32.totalorder %s89, %s103
      %p105 = scmp.eq.s32.totalorder %s19, 0
      %p106 = por %p104, %p105
      %s107 = ssub.s32 %s20, %s32
      %s108 = ssub.s32 %s21, %s28
      %s109 = sor.u32 %s107, %s108
      %p110 = scmp.eq.s32.totalorder %s109, 0
      %s112 = sadd.s32 %s111, 1
      %s113 = scalar_select %p110, %s111, %s112
      %p116 = pneg %p110
      %p117 = scmp.eq.s32.totalorder %s13, 1
      %p118 = por %p116, %p117
      %p119 = scmp.ne.s32.totalorder %s111, %s114
      %p120 = scmp.eq.s32.totalorder %s13, 0
      %p121 = por %p119, %p120
      %p122 = scmp.ne.s32.totalorder %s111, %s114
      %p123 = scmp.eq.s32.totalorder %s18, 1
      %p124 = por %p122, %p123
      %p125 = scmp.ne.s32.totalorder %s114, %s115
      %p126 = scmp.eq.s32.totalorder %s18, 0
      %p127 = por %p125, %p126
      %p128 = scmp.ne.s32.totalorder %s114, %s115
      %p129 = scmp.eq.s32.totalorder %s19, 1
      %p130 = por %p128, %p129
      %p132 = scmp.ne.s32.totalorder %s115, %s131
      %p133 = scmp.eq.s32.totalorder %s19, 0
      %p134 = por %p132, %p133
      %p135 = scmp.le.s32.totalorder 1, %s13
      %p136 = scmp.lt.s32.totalorder %s13, 3
      %p137 = pnand %p135, %p136
      %p138 = pneg %p137
      // Predicated region
      $region9: #{tpu_custom_call.1} parent=5 // pred_check
        _
      $region10: #{tpu_custom_call.1} parent=5 // pred_check_branch
        %140 = sbr.rel (%p137) target = $region12
      $region11: #{tpu_custom_call.1} parent=5 // pred_region
        %s141 = ssub.s32 %s13, 1
        // Predicated region
        $region13: #{tpu_custom_call.1} parent=11 // pred_check
          %p142 = pneg %p78
        $region14: #{tpu_custom_call.1} parent=11 // pred_check_branch
          %144 = sbr.rel (%p142) target = $region16
        $region15: #{tpu_custom_call.1} parent=11 // pred_region
          %s146 = ssub.s32 128, 128
          %147 = vsyncadd [#allocation6], %s146
          %s149 = sshll.u32 [#allocation5], 4
          %s150 = int_to_ptr.vmem [resolvable:$true] %s149
          %152 = dma.hbm_to_vmem [thread:$0]  %s1, 128, %s150, [#allocation6]
        $region16: #{tpu_custom_call.1} parent=11 // pred_fallthru
          _
        // Predicated region
        $region17: #{tpu_custom_call.1} parent=11 // pred_check
          %p153 = pneg %p99
        $region18: #{tpu_custom_call.1} parent=11 // pred_check_branch
          %155 = sbr.rel (%p153) target = $region20
        $region19: #{tpu_custom_call.1} parent=11 // pred_region
          _
        $region20: #{tpu_custom_call.1} parent=11 // pred_fallthru
          _
      $region12: #{tpu_custom_call.1} parent=5 // pred_fallthru
        _
      %p156 = scmp.lt.s32.totalorder %s13, 2
      // Predicated region
      $region21: #{tpu_custom_call.1} parent=5 // pred_check
        %p157 = pneg %p156
      $region22: #{tpu_custom_call.1} parent=5 // pred_check_branch
        %159 = sbr.rel (%p157) target = $region24
      $region23: #{tpu_custom_call.1} parent=5 // pred_region
        // Predicated region
        $region25: #{tpu_custom_call.1} parent=23 // pred_check
          %p160 = pneg %p51
        $region26: #{tpu_custom_call.1} parent=23 // pred_check_branch
          %162 = sbr.rel (%p160) target = $region28
        $region27: #{tpu_custom_call.1} parent=23 // pred_region
          %p163 = scmp.lt.s32.totalorder %s21, 0
          %s164 = scalar_select %p163, %s21, 0
          %p165 = scmp.lt.s32.totalorder %s20, 1
          %s166 = scalar_select %p165, %s20, 1
          %p167 = scmp.lt.s32.totalorder %s164, 0
          %s168 = scalar_select %p167, %s164, 0
          %s169 = sadd.s32 %s168, %s166
          %s170 = smul.addr %s169, 4
          %s171 = scalar_lea.vmem %s0, %s170
          %p172 = scmp.lt.s32.totalorder %s21, 0
          %s173 = scalar_select %p172, %s21, 0
        $region28: #{tpu_custom_call.1} parent=23 // pred_fallthru
          _
      $region24: #{tpu_custom_call.1} parent=5 // pred_fallthru
        _
      %p174 = scmp.le.s32.totalorder 1, %s13
      %p175 = scmp.lt.s32.totalorder %s13, 3
      %p176 = pnand %p174, %p175
      %p177 = pneg %p176
      // Predicated region
      $region29: #{tpu_custom_call.1} parent=5 // pred_check
        _
      $region30: #{tpu_custom_call.1} parent=5 // pred_check_branch
        %179 = sbr.rel (%p176) target = $region32
      $region31: #{tpu_custom_call.1} parent=5 // pred_region
        %s180 = ssub.s32 %s13, 1
        // Predicated region
        $region33: #{tpu_custom_call.1} parent=31 // pred_check
          %p181 = pneg %p78
        $region34: #{tpu_custom_call.1} parent=31 // pred_check_branch
          %183 = sbr.rel (%p181) target = $region36
        $region35: #{tpu_custom_call.1} parent=31 // pred_region
          %184 = dma.done [#allocation6], 128
        $region36: #{tpu_custom_call.1} parent=31 // pred_fallthru
          _
        %p185 = scmp.lt.s32.totalorder %s23, 0
        %s186 = scalar_select %p185, %s23, 0
        %p187 = scmp.lt.s32.totalorder %s22, 1
        %s188 = scalar_select %p187, %s22, 1
        %p189 = scmp.lt.s32.totalorder %s186, 0
        %s190 = scalar_select %p189, %s186, 0
        %s191 = sadd.s32 %s190, %s188
        %s192 = smul.addr %s191, 4
        %s193 = scalar_lea.vmem %s0, %s192
        %p194 = pneg %p57
        %p195 = pneg %p54
        %p196 = pneg %p78
        %p197 = pneg %p75
        %p198 = pneg %p99
        %p199 = pneg %p96
        %p200 = pneg %p127
        %p201 = pneg %p124
        %s202 = sand.u32 %s114, 1
        %s203 = scalar_lea.sflag [#allocation7], %s202
        %s204 = sand.u32 %s114, 1
        %s205 = smul.addr %s204, 8
        %s206 = scalar_lea.vmem [#allocation8], %s205
        %p207 = scmp.lt.s32.totalorder %s23, 0
        %s208 = scalar_select %p207, %s23, 0
        %p209 = scmp.lt.s32.totalorder %s22, 1
        %s210 = scalar_select %p209, %s22, 1
        %p211 = scmp.lt.s32.totalorder %s208, 0
        %s212 = scalar_select %p211, %s208, 0
        %s213 = sadd.s32 %s212, %s210
        %s214 = smul.addr %s213, 4
        %s215 = scalar_lea.vmem %s0, %s214
        %p216 = scmp.lt.s32.totalorder %s23, 0
        %s217 = scalar_select %p216, %s23, 0
        %p218 = scmp.eq.s32.totalorder %s23, 0
        // Predicated region
        $region37: #{tpu_custom_call.1} parent=31 // pred_check
          %p219 = pneg %p218
        $region38: #{tpu_custom_call.1} parent=31 // pred_check_branch
          %221 = sbr.rel (%p219) target = $region40
        $region39: #{tpu_custom_call.1} parent=31 // pred_region
          %vm222 = vcmask 19456
          %223 = vst.msk [vmem:[#allocation2] sm:$0xf] %vm222, 0.0
        $region40: #{tpu_custom_call.1} parent=31 // pred_fallthru
          _
        %v224 = vlaneseq
        %v225 = vand.u32 %v224, 127
        %s226 = smul.u32 %s23, 16
        %v227 = vstv %s226
        %v228 = vadd.s32 %v225, %v227
        %vm229 = vcmp.lt.s32.totalorder %v228, 16
        %v230 = vld [vmem:[%s215] sm:$0xf]
        %v231 = vsel %vm229, %v230, 0.0
        %v232 = vld [vmem:[#allocation2] sm:$0xf]
        %vm233 = vcmask 19456
        %234 = vst.msk [vmem:[#allocation3] sm:$0xf] %vm233, %v232
        %236 = vrot.lane.b32.xlu0 %v231, 3
        %v237 = vpop.permute.xlu0 %236
        %vm239 = vcmask 150552
        %240 = vst.msk [vmem:[#allocation3] sm:$0xf] %vm239, %v237
        %vm241 = vcmask 175256
        %242 = vst.msk [vmem:[#allocation3] sm:$0xf] %vm241, 0.0
        %243 = vrot.lane.b32.xlu0 %v231, 115
        %v244 = vpop.permute.xlu0 %243
        %246 = vst.msk [vmem:[#allocation2] sm:$0xf] %vm233, %v244
        %v247 = vld [vmem:[#allocation3] sm:$0xf]
        %vm248 = vcmask 150528
        %249 = vst.msk [vmem:[#allocation4] sm:$0xf] %vm248, %v247
        %v250 = vld [vmem:[#allocation3] sm:$0xf]
        %252 = vrot.lane.b32.xlu0 %v250, 127
        %v253 = vpop.permute.xlu0 %252
        %255 = vst.msk [vmem:[#allocation4 + $0x4] sm:$0xf] %vm248, %v253
        %v256 = vld [vmem:[#allocation3] sm:$0xf]
        %258 = vrot.lane.b32.xlu0 %v256, 126
        %v259 = vpop.permute.xlu0 %258
        %261 = vst.msk [vmem:[#allocation4 + $0x8] sm:$0xf] %vm248, %v259
        %v262 = vld [vmem:[#allocation3] sm:$0xf]
        %264 = vrot.lane.b32.xlu0 %v262, 125
        %v265 = vpop.permute.xlu0 %264
        %267 = vst.msk [vmem:[#allocation4 + $0xc] sm:$0xf] %vm248, %v265
        %v268 = vld [vmem:[#allocation5] sm:$0xff]
        %v269 = vld [vmem:[#allocation4] sm:$0xff]
        %v270 = vld [vmem:[#allocation4 + $0x8] sm:$0xff]
        %v271 = vld [vmem:[%s2] sm:$0xff]
        %273 = vset.pattern.permute.xlu0 0
        %274 = vperm.xlu0 %273, %v271
        %v275 = vpop.permute.xlu0 %274
        %vm277 = vcmask 130048
        %v279 = vsel %vm277, %v268, 0
        %281 = vmatprep.subr.mxu0 0.0
        %282 = vmatpush1.msra.mxu0 %v269
        %283 = vmatprep.subr.mxu0 0.0
        %284 = vmatpush1.msra.mxu0 %v270
        %285 = vmatprep.subr.mxu0 0.0
        %286 = vmatpush1.msra.mxu0 0.0
        %287 = vmatprep.subr.mxu0 0.0
        %288 = vmatpush1.msra.mxu0 0.0
        %289 = vmatprep.subr.mxu0 0.0
        %290 = vmatpush1.msra.mxu0 0.0
        %291 = vmatprep.subr.mxu0 0.0
        %292 = vmatpush1.msra.mxu0 0.0
        %293 = vmatprep.subr.mxu0 0.0
        %294 = vmatpush1.msra.mxu0 0.0
        %295 = vmatprep.subr.mxu0 0.0
        %296 = vmatpush1.msra.mxu0 0.0
        %297 = vmatprep.subr.mxu0 0.0
        %298 = vmatpush1.msra.mxu0 0.0
        %299 = vmatprep.subr.mxu0 0.0
        %300 = vmatpush1.msra.mxu0 0.0
        %301 = vmatprep.subr.mxu0 0.0
        %302 = vmatpush1.msra.mxu0 0.0
        %303 = vmatprep.subr.mxu0 0.0
        %304 = vmatpush1.msra.mxu0 0.0
        %305 = vmatprep.subr.mxu0 0.0
        %306 = vmatpush1.msra.mxu0 0.0
        %307 = vmatprep.subr.mxu0 0.0
        %308 = vmatpush1.msra.mxu0 0.0
        %309 = vmatprep.subr.mxu0 0.0
        %310 = vmatpush1.msra.mxu0 0.0
        %311 = vmatprep.subr.mxu0 0.0
        %312 = vmatpush1.msra.mxu0 0.0
        %313 = vmatprep.subr.mxu0 0.0
        %314 = vmatpush1.msra.mxu0 0.0
        %315 = vmatprep.subr.mxu0 0.0
        %316 = vmatpush1.msra.mxu0 0.0
        %317 = vmatprep.subr.mxu0 0.0
        %318 = vmatpush1.msra.mxu0 0.0
        %319 = vmatprep.subr.mxu0 0.0
        %320 = vmatpush1.msra.mxu0 0.0
        %321 = vmatprep.subr.mxu0 0.0
        %322 = vmatpush1.msra.mxu0 0.0
        %323 = vmatprep.subr.mxu0 0.0
        %324 = vmatpush1.msra.mxu0 0.0
        %325 = vmatprep.subr.mxu0 0.0
        %326 = vmatpush1.msra.mxu0 0.0
        %327 = vmatprep.subr.mxu0 0.0
        %328 = vmatpush1.msra.mxu0 0.0
        %329 = vmatprep.subr.mxu0 0.0
        %330 = vmatpush1.msra.mxu0 0.0
        %331 = vmatprep.subr.mxu0 0.0
        %332 = vmatpush1.msra.mxu0 0.0
        %333 = vmatprep.subr.mxu0 0.0
        %334 = vmatpush1.msra.mxu0 0.0
        %335 = vmatprep.subr.mxu0 0.0
        %336 = vmatpush1.msra.mxu0 0.0
        %337 = vmatprep.subr.mxu0 0.0
        %338 = vmatpush1.msra.mxu0 0.0
        %339 = vmatprep.subr.mxu0 0.0
        %340 = vmatpush1.msra.mxu0 0.0
        %341 = vmatprep.subr.mxu0 0.0
        %342 = vmatpush1.msra.mxu0 0.0
        %343 = vmatprep.subr.mxu0 0.0
        %344 = vmatpush1.msra.mxu0 0.0
        %345 = vmatprep.mubr.f32.mxu0 0.0
        %346 = vmatmul.mubr.f32.gmra.mrb[0].mxu0 %v279
        %v347 = vpop.f32.mrb[0].mxu0
        %v348 = vadd.f32 %v275, %v347
        %v349 = vpop.f32.mrb[0].mxu0
        %350 = vdwg.mxu0
        %vm351 = vcmask 154624
        %352 = vst.msk [vmem:[%s206] sm:$0xff] %vm351, %v348
        %s353 = sand.u32 %s114, 1
        %s354 = scalar_lea.sflag [#allocation7], %s353
        %s355 = sand.u32 %s114, 1
        %s356 = smul.addr %s355, 8
        %s357 = scalar_lea.vmem [#allocation8], %s356
        // Predicated region
        $region41: #{tpu_custom_call.1} parent=31 // pred_check
          %p358 = pneg %p124
        $region42: #{tpu_custom_call.1} parent=31 // pred_check_branch
          %360 = sbr.rel (%p358) target = $region44
        $region43: #{tpu_custom_call.1} parent=31 // pred_region
          %s362 = ssub.s32 128, 128
          %363 = vsyncadd %s354, %s362
          %s364 = sadd.s32 %s23, %s22
          %s365 = smul.addr %s364, 128
          %s366 = scalar_lea.hbm %s3, %s365
          %s368 = sshll.u32 %s357, 4
          %s369 = int_to_ptr.vmem [resolvable:$true] %s368
          %371 = dma.vmem_to_hbm [thread:$0]  %s369, 128, %s366, %s354
        $region44: #{tpu_custom_call.1} parent=31 // pred_fallthru
          _
      $region32: #{tpu_custom_call.1} parent=5 // pred_fallthru
        _
      %p372 = scmp.le.s32.totalorder 2, %s13
      // Predicated region
      $region45: #{tpu_custom_call.1} parent=5 // pred_check
        %p373 = pneg %p372
      $region46: #{tpu_custom_call.1} parent=5 // pred_check_branch
        %375 = sbr.rel (%p373) target = $region48
      $region47: #{tpu_custom_call.1} parent=5 // pred_region
        %s376 = ssub.s32 %s13, 2
        // Predicated region
        $region49: #{tpu_custom_call.1} parent=47 // pred_check
          %p377 = pneg %p130
        $region50: #{tpu_custom_call.1} parent=47 // pred_check_branch
          %379 = sbr.rel (%p377) target = $region52
        $region51: #{tpu_custom_call.1} parent=47 // pred_region
          %s380 = sand.u32 %s115, 1
          %s381 = scalar_lea.sflag [#allocation7], %s380
          %s382 = sand.u32 %s115, 1
          %s383 = smul.addr %s382, 8
          %s384 = scalar_lea.vmem [#allocation8], %s383
          %385 = dma.done %s381, 128
        $region52: #{tpu_custom_call.1} parent=47 // pred_fallthru
          _
      $region48: #{tpu_custom_call.1} parent=5 // pred_fallthru
        _
    $region6: #{tpu_custom_call.1} parent=1 // loop_footer
      %s17 = sadd.s32 1, %s13
    $region7: #{tpu_custom_call.1} parent=1 // loop_footer_branch
      %12 = sbr.rel target = $region3
    $region8: #{tpu_custom_call.1} parent=1 // loop_exit
      _
    %386 = vsyncpa [#allocation6], 1
    %s387 = scalar_lea.sflag [#allocation6], 1
    %388 = vsyncpa %s387, 1
    %389 = vsyncpa [#allocation7], 1
    %s390 = scalar_lea.sflag [#allocation7], 1
    %391 = vsyncpa %s390, 1

</llo_original>
